<compile_context>
chip_gen: v5e
topology: v5e:2x2
jax: 0.10.0
libtpu: 0.0.40
codegen_flags: <defaults>
</compile_context>

<pallas_src>
import jax
import jax.numpy as jnp
from jax.experimental import pallas as pl
from jax.experimental.pallas import tpu as pltpu

_LANES = 128  # vreg lane width / VMEM lane-tiling granularity


def _round_up(x: int, m: int) -> int:
    return (x + m - 1) // m * m


def _vmem_capacity_bytes() -> int:
    """Physical VMEM per TensorCore (128 MiB v5e/v6e, 64 MiB v7x); safe fallback."""
    try:
        info = pltpu.get_tpu_info()
        for attr in ("vmem_capacity_bytes", "vmem_size_bytes", "vmem_bytes"):
            cap = getattr(info, attr, None)
            if cap:
                return int(cap)
    except Exception:
        pass
    return 64 * 1024 * 1024  # conservative (v7x per-TensorCore) -> works everywhere


def _make_fm_kernel(dims):
    """Build the FM kernel for a fixed tuple of per-input feature widths."""

    def kernel(*refs):
        *x_refs, o_ref = refs

        # Per-lane partial accumulators, updated with VPU adds; the XLU
        # lane-reduce to (tb, 1) happens once per tile, not twice per field.
        s_vec = None   # (tb, 128) f32 running per-lane sum
        ss_vec = None  # (tb, 128) f32 running per-lane sum of squares
        s_tail = None  # (tb, 1)   f32 sums of the <128-lane remainders
        ss_tail = None

        for x_ref, d in zip(x_refs, dims):
            nfull, rem = divmod(d, _LANES)
            for j in range(nfull):
                lo = j * _LANES
                chunk = x_ref[:, lo:lo + _LANES].astype(jnp.float32)  # f32 math (v5e VPU)
                sq = chunk * chunk
                if s_vec is None:
                    s_vec, ss_vec = chunk, sq
                else:
                    s_vec = s_vec + chunk
                    ss_vec = ss_vec + sq
            if rem:
                lo = nfull * _LANES
                tail = x_ref[:, lo:lo + rem].astype(jnp.float32)
                ts = jnp.sum(tail, axis=1, keepdims=True)
                tss = jnp.sum(tail * tail, axis=1, keepdims=True)
                if s_tail is None:
                    s_tail, ss_tail = ts, tss
                else:
                    s_tail = s_tail + ts
                    ss_tail = ss_tail + tss

        if s_vec is not None:
            s = jnp.sum(s_vec, axis=1, keepdims=True)    # single XLU reduce
            ss = jnp.sum(ss_vec, axis=1, keepdims=True)  # single XLU reduce
            if s_tail is not None:
                s = s + s_tail
                ss = ss + ss_tail
        else:
            s, ss = s_tail, ss_tail

        o_ref[...] = (0.5 * (s * s - ss)).astype(o_ref.dtype)

    return kernel


def factorized_machine(embeddings):
    """Pallas equivalent of FactorizedMachineLayer.forward.  Returns (B, 1)."""
    B = embeddings[0].shape[0]
    xs = [jnp.reshape(e, (B, -1)) for e in embeddings]  # flatten(1): metadata-only

    # --- lane-dense inputs -------------------------------------------------
    # Narrow (<128) fields waste 4-16x of every vreg/VMEM tile; pack them once
    # into a single lane-dense input.  Wide fields stay separate (no concat
    # traffic).  FM is permutation-invariant over features, so order is free.
    wide = [x for x in xs if x.shape[1] >= _LANES]
    narrow = [x for x in xs if x.shape[1] < _LANES]
    inputs = list(wide)
    if len(narrow) == 1:
        inputs.append(narrow[0])
    elif len(narrow) > 1:
        inputs.append(jnp.concatenate(narrow, axis=1))

    dims = [int(x.shape[1]) for x in inputs]
    itemsizes = [jnp.dtype(x.dtype).itemsize for x in inputs]
    total_f = sum(int(x.shape[1]) for x in xs)
    out_dtype = jnp.result_type(*[x.dtype for x in xs])
    out_itemsize = jnp.dtype(out_dtype).itemsize

    # --- per-generation VMEM budget & batch-tile selection -------------------
    cap = _vmem_capacity_bytes()                             # 128 MiB v5e/v6e, 64 MiB v7x
    vmem_limit = int(min(3 * cap // 4, 96 * 1024 * 1024))    # 96 MiB / 48 MiB (v7x)
    tile_budget = vmem_limit // 2                            # headroom for compiler scratch

    # Real per-row VMEM footprint (lane padding included):
    #   inputs, double-buffered:   2 * itemsize * round_up(d, 128)
    #   (tb, 1) out, lane-padded:  2 * 128 * out_itemsize
    #   in-kernel f32 temporaries (lane accumulators + chunk temps): ~4*128*4
    bytes_per_row = (
        2 * sum(isz * _round_up(d, _LANES) for d, isz in zip(dims, itemsizes))
        + 2 * _LANES * out_itemsize
        + 4 * _LANES * 4
    )
    tb = max(8, (tile_budget // bytes_per_row) // 8 * 8)

    if B < 16:
        tb = B  # single full block: (B, d) equals the array dims -> always legal
    else:
        # Guarantee >=2 grid steps so ("parallel",) shards across both v7x TCs;
        # the VMEM budget still caps the tile for large batches.
        tb = min(tb, _round_up(pl.cdiv(B, 2), 8))
    grid = (pl.cdiv(B, tb),)
    # Ragged last tile computes on padded/garbage rows; benign, because those
    # rows fall outside the (B, 1) output and are dropped on writeback.

    in_specs = [pl.BlockSpec((tb, d), lambda i: (i, 0)) for d in dims]
    out_spec = pl.BlockSpec((tb, 1), lambda i: (i, 0))

    cost = pl.CostEstimate(
        flops=3 * B * total_f,  # mul + two accumulate-adds per element (approx)
        transcendentals=0,
        bytes_accessed=sum(B * int(x.shape[1]) * jnp.dtype(x.dtype).itemsize
                           for x in xs) + B * out_itemsize,
    )

    return pl.pallas_call(
        _make_fm_kernel(tuple(dims)),
        out_shape=jax.ShapeDtypeStruct((B, 1), out_dtype),
        grid_spec=pltpu.PrefetchScalarGridSpec(
            num_scalar_prefetch=0,
            grid=grid,
            in_specs=in_specs,
            out_specs=out_spec,
        ),
        compiler_params=pltpu.CompilerParams(
            dimension_semantics=("parallel",),   # shard batch tiles across TCs (v7x)
            vmem_limit_bytes=vmem_limit,
        ),
        cost_estimate=cost,
    )(*inputs)


if __name__ == "__main__":
    key = jax.random.PRNGKey(0)

    # --- case 1: module-spec shapes (batch=2, narrow fields, rank-3 flatten) ---
    k1, k2, k3 = jax.random.split(key, 3)
    batch = 2
    e1 = jax.random.normal(k1, (batch, 16), jnp.float32)
    e2 = jax.random.normal(k2, (batch, 8), jnp.float32)
    e3 = jax.random.normal(k3, (batch, 4, 4), jnp.float32)   # exercises flatten(1)

    out = factorized_machine([e1, e2, e3])
    jax.block_until_ready(out)

    flat = jnp.concatenate([e1, e2, e3.reshape(batch, -1)], axis=1)
    s = jnp.sum(flat, axis=1, keepdims=True)
    ss = jnp.sum(flat * flat, axis=1, keepdims=True)
    ref = 0.5 * (s * s - ss)
    assert out.shape == (batch, 1), out.shape
    assert jnp.allclose(out, ref, atol=1e-3, rtol=1e-4), (out, ref)

    # --- case 2: wide (>=128) field + packed narrow fields + ragged batch tile ---
    k4, k5, k6 = jax.random.split(jax.random.PRNGKey(0), 3)
    b2 = 37
    f1 = jax.random.normal(k4, (b2, 160), jnp.float32)  # one full 128 chunk + 32 tail
    f2 = jax.random.normal(k5, (b2, 24), jnp.float32)
    f3 = jax.random.normal(k6, (b2, 8), jnp.float32)

    out2 = factorized_machine([f1, f2, f3])
    jax.block_until_ready(out2)

    flat2 = jnp.concatenate([f1, f2, f3], axis=1)
    s2 = jnp.sum(flat2, axis=1, keepdims=True)
    ss2 = jnp.sum(flat2 * flat2, axis=1, keepdims=True)
    ref2 = 0.5 * (s2 * s2 - ss2)
    assert out2.shape == (b2, 1), out2.shape
    assert jnp.allclose(out2, ref2, atol=1e-3, rtol=1e-4), \
        float(jnp.max(jnp.abs(out2 - ref2)))

    print("KERNEL_OK")
</pallas_src>

<mosaic_0001>
module attributes {stable_mosaic.version = 11 : i64} {
  func.func @kernel(%arg0: i32, %arg1: memref<2x40xf32, #tpu.memory_space<vmem>>, %arg2: memref<2x1xf32, #tpu.memory_space<vmem>>) attributes {dimension_semantics = [#tpu.dimension_semantics<parallel>], iteration_bounds = array<i64: 1>, scalar_prefetch = 0 : i64, scratch_operands = 0 : i64, tpu.core_type = #tpu.core_type<tc>, window_params = [{transform_indices = @transform_0, window_bounds = array<i64: 2, 40>}, {transform_indices = @transform_1, window_bounds = array<i64: 2, 1>}]} {
    %c0 = arith.constant 0 : index
    %c0_0 = arith.constant 0 : index
    %0 = vector.load %arg1[%c0, %c0_0] : memref<2x40xf32, #tpu.memory_space<vmem>>, vector<2x40xf32>
    %cst = arith.constant dense<0.000000e+00> : vector<2xf32>
    %1 = vector.multi_reduction <add>, %0, %cst [1] : vector<2x40xf32> to vector<2xf32>
    %2 = vector.shape_cast %1 : vector<2xf32> to vector<2x1xf32>
    %3 = arith.mulf %0, %0 : vector<2x40xf32>
    %cst_1 = arith.constant dense<0.000000e+00> : vector<2xf32>
    %4 = vector.multi_reduction <add>, %3, %cst_1 [1] : vector<2x40xf32> to vector<2xf32>
    %5 = vector.shape_cast %4 : vector<2xf32> to vector<2x1xf32>
    %6 = arith.mulf %2, %2 : vector<2x1xf32>
    %7 = arith.subf %6, %5 : vector<2x1xf32>
    %cst_2 = arith.constant 5.000000e-01 : f32
    %8 = vector.broadcast %cst_2 : f32 to vector<2x1xf32>
    %9 = arith.mulf %8, %7 : vector<2x1xf32>
    %c0_3 = arith.constant 0 : index
    %c0_4 = arith.constant 0 : index
    %10 = vector.load %arg2[%c0_3, %c0_4] : memref<2x1xf32, #tpu.memory_space<vmem>>, vector<2x1xf32>
    tpu.vector_store %arg2[%c0_3, %c0_4], %9 {strides = array<i32>} : memref<2x1xf32, #tpu.memory_space<vmem>>, vector<2x1xf32>,
    return
  }
  func.func @transform_0(%arg0: i32) -> (i32, i32) {
    %c0_i32 = arith.constant 0 : i32
    %c0_i32_0 = arith.constant 0 : i32
    return %arg0, %c0_i32 : i32, i32
  }
  func.func @transform_1(%arg0: i32) -> (i32, i32) {
    %c0_i32 = arith.constant 0 : i32
    %c0_i32_0 = arith.constant 0 : i32
    return %arg0, %c0_i32 : i32, i32
  }
}

</mosaic_0001>

<llo_original>
// kernel: tpu_custom_call.1
$region0: #{tpu_custom_call.1}
  #allocation0 [shape = 'u32[]', space=smem, size = 0x4, offset = 0x4, fixed_abs, tag = 'smem constant byte address 0x4 - core index']
  #allocation1 [shape = 'u32[72,128]{1,0:T(1,128)}', space=vmem, size = 0x9000, scoped, tag = 'internal scratch']
  %s0 = inlined_call_operand.hbm [shape: f32[2,40], index: 0, kind: input, shape index: {}]
  %s1 = inlined_call_operand.vmem [shape: f32[2,1], index: 1, kind: output, shape index: {}]
  %s2 = sld [smem:[#allocation0]]
  $region18: #{tpu_custom_call.1} parent=0
    _
  %s4 = ssub.s32 1, %s2
  %s5 = scalar_select 0, %s4, %s2
  $region1: #{tpu_custom_call.1} parent=0
    #allocation2 [shape = 'u8[1024]{0}', space=vmem, size = 0x400, scoped, tag = 'input window, operand 0, single buffered']
    #allocation3 [shape = 's32[1]{0}', space=sflag, size = 0x4, scoped, tag = 'scoped memory for tpu_custom_call.1']
    %6 = vsyncpa [#allocation3], 0
    // Predicated region
    $region2: #{tpu_custom_call.1} parent=1 // pred_check
      _
    $region3: #{tpu_custom_call.1} parent=1 // pred_check_branch
      %8 = sbr.rel (0) target = $region5
    $region4: #{tpu_custom_call.1} parent=1 // pred_region
      %10 = vsyncadd [#allocation3], 0
      %s12 = sshll.u32 %s0, 4
      %s13 = int_to_ptr.hbm [resolvable:$true] %s12
      %s14 = sshll.u32 [#allocation2], 4
      %s15 = int_to_ptr.vmem [resolvable:$true] %s14
      %17 = dma.hbm_to_vmem [thread:$0]  %s13, 32, %s15, [#allocation3]
    $region5: #{tpu_custom_call.1} parent=1 // pred_fallthru
      _
    // Predicated region
    $region6: #{tpu_custom_call.1} parent=1 // pred_check
      _
    $region7: #{tpu_custom_call.1} parent=1 // pred_check_branch
      %19 = sbr.rel (0) target = $region9
    $region8: #{tpu_custom_call.1} parent=1 // pred_region
      %21 = dma.done [#allocation3], 32
    $region9: #{tpu_custom_call.1} parent=1 // pred_fallthru
      _
    %v22 = vld [vmem:[#allocation2] sm:$0x3]
    %vm23 = vcmask 320512
    %v24 = vsel %vm23, %v22, 0.0
    %25 = vadd.xlane.f32.xlu0 %v24
    %v26 = vpop.xlane.xlu0 %25
    %v27 = vmul.f32 %v22, %v22
    %v28 = vsel %vm23, %v27, 0.0
    %29 = vadd.xlane.f32.xlu0 %v28
    %v30 = vpop.xlane.xlu0 %29
    %v31 = vmul.f32 %v26, %v26
    %v32 = vsub.f32 %v31, %v30
    %v33 = vmul.f32 %v32, 0.5
    %vm34 = vcmask 1024
    %35 = vst.msk [vmem:[%s1] sm:$0x3] %vm34, %v33
    // Predicated region
    $region10: #{tpu_custom_call.1} parent=1 // pred_check
      _
    $region11: #{tpu_custom_call.1} parent=1 // pred_check_branch
      %37 = sbr.rel (0) target = $region13
    $region12: #{tpu_custom_call.1} parent=1 // pred_region
      _
    $region13: #{tpu_custom_call.1} parent=1 // pred_fallthru
      _
    // Predicated region
    $region14: #{tpu_custom_call.1} parent=1 // pred_check
      _
    $region15: #{tpu_custom_call.1} parent=1 // pred_check_branch
      %39 = sbr.rel (0) target = $region17
    $region16: #{tpu_custom_call.1} parent=1 // pred_region
      _
    $region17: #{tpu_custom_call.1} parent=1 // pred_fallthru
      _
    %40 = vsyncpa [#allocation3], 1

</llo_original>
